<compile_context>
chip_gen: v5e
topology: v5e:2x2
jax: 0.10.0
libtpu: 0.0.40
codegen_flags: <defaults>
</compile_context>

<pallas_src>
import functools

import jax
import jax.numpy as jnp
from jax import lax
from jax.experimental import pallas as pl
from jax.experimental.pallas import tpu as pltpu

_BIG = 1.0e12

_MAX_TILE_ROWS = 1024          # review: 512-1024 rows per tile
_TARGET_GRID_STEPS = 8         # aim for >=8 grid steps (pipelining + megacore)
_INPUT_VMEM_BUDGET = 8 * 1024 * 1024


def _round_up(x, m):
    return ((x + m - 1) // m) * m


def _choose_tile_rows(rows, row_bytes):
    """Rows per grid step: multiple of 32, <= _MAX_TILE_ROWS, ~8+ steps, VMEM-safe."""
    if rows <= 32:
        return rows
    tb = min(_MAX_TILE_ROWS, _round_up(pl.cdiv(rows, _TARGET_GRID_STEPS), 32))
    budget_rows = _INPUT_VMEM_BUDGET // (2 * max(row_bytes, 1))
    budget_rows = max(32, (budget_rows // 32) * 32)
    return max(32, min(tb, budget_rows))


def _vmem_limit(tb, row_bytes):
    # double-buffered input slabs + generous headroom for intermediates,
    # constants and the tiny output.  Padded (lane/sublane) sizes are used.
    need = 2 * tb * row_bytes + 8 * 1024 * 1024
    return int(min(32 * 1024 * 1024, max(need, 16 * 1024 * 1024)))


def _exact_dot(x, onehot01):
    """dot(x, M) with a 0/1 f32 matrix, ~f32-accurate under any MXU precision.

    Split x into a bf16-exact hi part and a small lo part; both pass through
    the (possibly bf16-truncating) matmul with relative error <= ~2^-17.
    """
    hi = x.astype(jnp.bfloat16).astype(jnp.float32)
    lo = x - hi
    return (jnp.dot(hi, onehot01, preferred_element_type=jnp.float32)
            + jnp.dot(lo, onehot01, preferred_element_type=jnp.float32))


# ----------------------------------------------------------------------------
# Kernel 1: lane-packed path (label_num is a power of two < 128).
# Block layout: (tile_rows, 128) where each 128-lane row holds G = 128//L
# consecutive samples' logits.  Output block is (tile_rows, G) per-sample loss.
# ----------------------------------------------------------------------------
def _circle_packed_kernel(y_pred_ref, y_true_ref, bcast_ref, seg_ref, pick_ref,
                          out_ref, *, label_num, tile_rows, total_rows):
    L = label_num
    y = y_pred_ref[...].astype(jnp.float32)          # (TB, 128)
    is_pos = y_true_ref[...] != 0                     # (TB, 128) bool

    # Mask ragged tail rows (emitted only when the grid does not divide evenly)
    # so garbage rows never produce inf/NaN in discarded output lanes.
    if total_rows % tile_rows != 0:
        row = (lax.broadcasted_iota(jnp.int32, y.shape, 0)
               + pl.program_id(0) * tile_rows)
        valid = row < total_rows
        y = jnp.where(valid, y, 0.0)
        is_pos = jnp.logical_and(is_pos, valid)

    # Masked candidates (exp(-1e12) flushes to 0, identical to the torch code).
    neg_c = jnp.where(is_pos, -_BIG, y)               # keep  y where label == 0
    pos_c = jnp.where(is_pos, -y, -_BIG)              # keep -y where label == 1

    # Windowed max over lane windows of length L (log2(L) XLU rolls): the value
    # at lane g*L + L - 1 is the max of sample-group g.
    def window_max(x):
        s = 1
        while s < L:
            x = jnp.maximum(x, pltpu.roll(x, shift=s, axis=1))
            s *= 2
        return x

    w_neg = window_max(neg_c)
    w_pos = window_max(pos_c)

    bcast = bcast_ref[...]    # (128,128) one-hot: col i <- row (i//L)*L + L-1
    seg = seg_ref[...]        # (128, G)  0/1 segment-sum matrix: row j -> col j//L
    pick = pick_ref[...]      # (128, G)  one-hot: col g <- row g*L + L-1

    # Per-lane stabilizer, uniform within each group by construction (every
    # lane of a group reads the same source lane).  The logsumexp-with-zero
    # identity  lse = m + log(sum(exp(x-m)) + exp(-m))  is exact for *any*
    # per-group-uniform m, so MXU rounding here cannot change the result.
    m_neg = jnp.maximum(jnp.dot(w_neg, bcast, preferred_element_type=jnp.float32), 0.0)
    m_pos = jnp.maximum(jnp.dot(w_pos, bcast, preferred_element_type=jnp.float32), 0.0)
    # Round the stabilizers to bf16 so that the one-hot extraction below is
    # bit-identical to the per-lane value regardless of matmul precision.
    m_neg = m_neg.astype(jnp.bfloat16).astype(jnp.float32)
    m_pos = m_pos.astype(jnp.bfloat16).astype(jnp.float32)

    # ONE exp per element, on fully occupied 128-lane vregs.
    e = jnp.exp(jnp.where(is_pos, -y - m_pos, y - m_neg))
    e_pos = jnp.where(is_pos, e, 0.0)
    e_neg = e - e_pos

    # Segmented sums + per-group stabilizer extraction on the idle MXU (exact).
    s_neg = _exact_dot(e_neg, seg)                                    # (TB, G)
    s_pos = _exact_dot(e_pos, seg)                                    # (TB, G)
    m_neg_g = jnp.dot(m_neg, pick, preferred_element_type=jnp.float32)
    m_pos_g = jnp.dot(m_pos, pick, preferred_element_type=jnp.float32)

    out_ref[...] = (m_neg_g + jnp.log(s_neg + jnp.exp(-m_neg_g))
                    + m_pos_g + jnp.log(s_pos + jnp.exp(-m_pos_g)))   # (TB, G)


# ----------------------------------------------------------------------------
# Kernel 2: generic row path for awkward label counts (occupancy L/ceil128(L)).
# ----------------------------------------------------------------------------
def _circle_unpacked_kernel(y_pred_ref, y_true_ref, out_ref, *, tile_rows, total_rows):
    y = y_pred_ref[...].astype(jnp.float32)           # (TB, L)
    is_pos = y_true_ref[...] != 0

    if total_rows % tile_rows != 0:
        row = (lax.broadcasted_iota(jnp.int32, y.shape, 0)
               + pl.program_id(0) * tile_rows)
        valid = row < total_rows
        y = jnp.where(valid, y, 0.0)
        is_pos = jnp.logical_and(is_pos, valid)

    neg_c = jnp.where(is_pos, -_BIG, y)
    pos_c = jnp.where(is_pos, -y, -_BIG)

    m_neg = jnp.maximum(jnp.max(neg_c, axis=-1, keepdims=True), 0.0)  # (TB, 1)
    m_pos = jnp.maximum(jnp.max(pos_c, axis=-1, keepdims=True), 0.0)

    # ONE exp per element; negative/positive branch sums share it.
    e = jnp.exp(jnp.where(is_pos, -y - m_pos, y - m_neg))
    e_pos = jnp.where(is_pos, e, 0.0)
    e_neg = e - e_pos
    s_neg = jnp.sum(e_neg, axis=-1, keepdims=True)
    s_pos = jnp.sum(e_pos, axis=-1, keepdims=True)

    out_ref[...] = (m_neg + jnp.log(s_neg + jnp.exp(-m_neg))
                    + m_pos + jnp.log(s_pos + jnp.exp(-m_pos)))       # (TB, 1)


# ----------------------------------------------------------------------------
# Wrapper
# ----------------------------------------------------------------------------
@functools.partial(jax.jit, static_argnames=("average",))
def circle_loss(y_pred, y_true, average=True):
    """Pallas implementation of CircleLoss.forward (multi-label loss)."""
    assert y_pred.ndim == 2 and y_pred.shape == y_true.shape
    B, L = y_pred.shape
    t_size = jnp.dtype(y_true.dtype).itemsize
    compiler = dict()

    use_packed = (L < 128) and (128 % L == 0) and (B % (128 // L) == 0)

    if use_packed:
        G = 128 // L
        rows = B // G
        row_bytes = 128 * (4 + t_size)                 # lane-dense packed row
        tb = _choose_tile_rows(rows, row_bytes)
        grid = (pl.cdiv(rows, tb),)

        # Tiny constant 0/1 matrices for the segmented reductions.  Constant
        # index_map -> DMA'd into VMEM once and kept resident across the grid.
        j = jnp.arange(128, dtype=jnp.int32)
        g = jnp.arange(G, dtype=jnp.int32)
        bcast = (j[:, None] == (j[None, :] // L) * L + (L - 1)).astype(jnp.float32)
        seg = ((j[:, None] // L) == g[None, :]).astype(jnp.float32)
        pick = (j[:, None] == g[None, :] * L + (L - 1)).astype(jnp.float32)

        kernel = functools.partial(_circle_packed_kernel, label_num=L,
                                   tile_rows=tb, total_rows=rows)
        out = pl.pallas_call(
            kernel,
            out_shape=jax.ShapeDtypeStruct((rows, G), jnp.float32),
            grid_spec=pltpu.PrefetchScalarGridSpec(
                num_scalar_prefetch=0,
                grid=grid,
                in_specs=[
                    pl.BlockSpec((tb, 128), lambda i: (i, 0)),   # packed y_pred
                    pl.BlockSpec((tb, 128), lambda i: (i, 0)),   # packed y_true
                    pl.BlockSpec((128, 128), lambda i: (0, 0)),  # bcast (resident)
                    pl.BlockSpec((128, G), lambda i: (0, 0)),    # seg   (resident)
                    pl.BlockSpec((128, G), lambda i: (0, 0)),    # pick  (resident)
                ],
                out_specs=pl.BlockSpec((tb, G), lambda i: (i, 0)),
            ),
            compiler_params=pltpu.CompilerParams(
                dimension_semantics=("parallel",),
                vmem_limit_bytes=_vmem_limit(tb, row_bytes),
            ),
            cost_estimate=pl.CostEstimate(
                flops=16 * B * L,
                transcendentals=B * L + 4 * B,
                bytes_accessed=B * L * (4 + t_size) + B * 4,
            ),
        )(y_pred.reshape(rows, 128), y_true.reshape(rows, 128), bcast, seg, pick)
        per_sample = out.reshape(B)
    else:
        l_pad = _round_up(L, 128)
        row_bytes = l_pad * (4 + t_size)               # lane-padded VMEM row
        tb = _choose_tile_rows(B, row_bytes)
        grid = (pl.cdiv(B, tb),)
        kernel = functools.partial(_circle_unpacked_kernel,
                                   tile_rows=tb, total_rows=B)
        out = pl.pallas_call(
            kernel,
            out_shape=jax.ShapeDtypeStruct((B, 1), jnp.float32),
            grid_spec=pltpu.PrefetchScalarGridSpec(
                num_scalar_prefetch=0,
                grid=grid,
                in_specs=[pl.BlockSpec((tb, L), lambda i: (i, 0)),
                          pl.BlockSpec((tb, L), lambda i: (i, 0))],
                out_specs=pl.BlockSpec((tb, 1), lambda i: (i, 0)),
            ),
            compiler_params=pltpu.CompilerParams(
                dimension_semantics=("parallel",),
                vmem_limit_bytes=_vmem_limit(tb, row_bytes),
            ),
            cost_estimate=pl.CostEstimate(
                flops=12 * B * L,
                transcendentals=B * L + 4 * B,
                bytes_accessed=B * L * (4 + t_size) + B * 4,
            ),
        )(y_pred, y_true)
        per_sample = out[:, 0]

    if average:
        return jnp.mean(per_sample)
    return per_sample


def _circle_loss_ref(y_pred, y_true, average=True):
    """Pure-JAX reference mirroring the PyTorch code (concat + logsumexp)."""
    y_pred = (1.0 - 2.0 * y_true) * y_pred
    y_pred_neg = y_pred - y_true * _BIG
    y_pred_pos = y_pred - (1.0 - y_true) * _BIG
    zeros = jnp.zeros_like(y_pred[..., :1])
    y_pred_neg = jnp.concatenate([y_pred_neg, zeros], axis=-1)
    y_pred_pos = jnp.concatenate([y_pred_pos, zeros], axis=-1)
    neg_loss = jax.scipy.special.logsumexp(y_pred_neg, axis=-1)
    pos_loss = jax.scipy.special.logsumexp(y_pred_pos, axis=-1)
    total = neg_loss + pos_loss
    return jnp.mean(total) if average else total


if __name__ == "__main__":
    keys = jax.random.split(jax.random.PRNGKey(0), 8)

    # Case 1: label_num=32 (power of two < 128 -> lane-packed path), int8 labels.
    b1, l1 = 8, 32
    yp1 = jax.random.normal(keys[0], (b1, l1), dtype=jnp.float32) * 3.0
    yt1 = jax.random.bernoulli(keys[1], p=0.3, shape=(b1, l1)).astype(jnp.int8)
    out_mean = jax.block_until_ready(circle_loss(yp1, yt1, average=True))
    ref_mean = _circle_loss_ref(yp1, yt1.astype(jnp.float32), average=True)
    assert jnp.allclose(out_mean, ref_mean, rtol=1e-4, atol=1e-5), (out_mean, ref_mean)
    out_vec = jax.block_until_ready(circle_loss(yp1, yt1, average=False))
    ref_vec = _circle_loss_ref(yp1, yt1.astype(jnp.float32), average=False)
    assert jnp.allclose(out_vec, ref_vec, rtol=1e-4, atol=1e-5)

    # Case 2: awkward label count -> generic (unpacked) row kernel, single tile.
    b2, l2 = 12, 50
    yp2 = jax.random.normal(keys[2], (b2, l2), dtype=jnp.float32) * 2.0
    yt2 = jax.random.bernoulli(keys[3], p=0.25, shape=(b2, l2)).astype(jnp.int8)
    out2 = jax.block_until_ready(circle_loss(yp2, yt2, average=False))
    ref2 = _circle_loss_ref(yp2, yt2.astype(jnp.float32), average=False)
    assert jnp.allclose(out2, ref2, rtol=1e-4, atol=1e-5)

    # Case 3: packed path with a multi-step grid and a ragged tail, float labels.
    b3, l3 = 500, 32
    yp3 = jax.random.normal(keys[4], (b3, l3), dtype=jnp.float32) * 4.0
    yt3 = jax.random.bernoulli(keys[5], p=0.2, shape=(b3, l3)).astype(jnp.float32)
    out3 = jax.block_until_ready(circle_loss(yp3, yt3, average=False))
    ref3 = _circle_loss_ref(yp3, yt3, average=False)
    assert jnp.allclose(out3, ref3, rtol=1e-4, atol=1e-5)

    # Case 4: unpacked path with a multi-step grid and a ragged tail.
    b4, l4 = 300, 50
    yp4 = jax.random.normal(keys[6], (b4, l4), dtype=jnp.float32) * 2.0
    yt4 = jax.random.bernoulli(keys[7], p=0.35, shape=(b4, l4)).astype(jnp.int8)
    out4 = jax.block_until_ready(circle_loss(yp4, yt4, average=True))
    ref4 = _circle_loss_ref(yp4, yt4.astype(jnp.float32), average=True)
    assert jnp.allclose(out4, ref4, rtol=1e-4, atol=1e-5)

    print("KERNEL_OK")
</pallas_src>

<mosaic_0001>
module attributes {stable_mosaic.version = 11 : i64} {
  func.func @_circle_packed_kernel(%arg0: i32, %arg1: memref<2x128xf32, #tpu.memory_space<vmem>>, %arg2: memref<2x128xi8, #tpu.memory_space<vmem>>, %arg3: memref<128x128xf32, #tpu.memory_space<vmem>>, %arg4: memref<128x4xf32, #tpu.memory_space<vmem>>, %arg5: memref<128x4xf32, #tpu.memory_space<vmem>>, %arg6: memref<2x4xf32, #tpu.memory_space<vmem>>) attributes {dimension_semantics = [#tpu.dimension_semantics<parallel>], iteration_bounds = array<i64: 1>, scalar_prefetch = 0 : i64, scratch_operands = 0 : i64, tpu.core_type = #tpu.core_type<tc>, window_params = [{transform_indices = @transform_0, window_bounds = array<i64: 2, 128>}, {transform_indices = @transform_1, window_bounds = array<i64: 2, 128>}, {pipeline_mode = #tpu.pipeline_mode<synchronous>, transform_indices = @transform_2, window_bounds = array<i64: 128, 128>}, {pipeline_mode = #tpu.pipeline_mode<synchronous>, transform_indices = @transform_3, window_bounds = array<i64: 128, 4>}, {pipeline_mode = #tpu.pipeline_mode<synchronous>, transform_indices = @transform_4, window_bounds = array<i64: 128, 4>}, {transform_indices = @transform_5, window_bounds = array<i64: 2, 4>}]} {
    %c0 = arith.constant 0 : index
    %c0_0 = arith.constant 0 : index
    %0 = vector.load %arg1[%c0, %c0_0] : memref<2x128xf32, #tpu.memory_space<vmem>>, vector<2x128xf32>
    %c0_1 = arith.constant 0 : index
    %c0_2 = arith.constant 0 : index
    %1 = vector.load %arg2[%c0_1, %c0_2] : memref<2x128xi8, #tpu.memory_space<vmem>>, vector<2x128xi8>
    %c0_i8 = arith.constant 0 : i8
    %2 = vector.broadcast %c0_i8 : i8 to vector<2x128xi8>
    %3 = arith.cmpi ne, %1, %2 : vector<2x128xi8>
    %cst = arith.constant -9.99999995E+11 : f32
    %4 = vector.broadcast %cst : f32 to vector<2x128xf32>
    %5 = arith.select %3, %4, %0 : vector<2x128xi1>, vector<2x128xf32>
    %cst_3 = arith.constant 0.000000e+00 : f32
    %6 = vector.broadcast %cst_3 : f32 to vector<2x128xf32>
    %7 = arith.subf %6, %0 : vector<2x128xf32>
    %cst_4 = arith.constant -9.99999995E+11 : f32
    %8 = vector.broadcast %cst_4 : f32 to vector<2x128xf32>
    %9 = arith.select %3, %7, %8 : vector<2x128xi1>, vector<2x128xf32>
    %c1_i32 = arith.constant 1 : i32
    %10 = tpu.dynamic_rotate %5 by %c1_i32 dim 1 : vector<2x128xf32>, i32 -> vector<2x128xf32>
    %11 = arith.maximumf %5, %10 : vector<2x128xf32>
    %c2_i32 = arith.constant 2 : i32
    %12 = tpu.dynamic_rotate %11 by %c2_i32 dim 1 : vector<2x128xf32>, i32 -> vector<2x128xf32>
    %13 = arith.maximumf %11, %12 : vector<2x128xf32>
    %c4_i32 = arith.constant 4 : i32
    %14 = tpu.dynamic_rotate %13 by %c4_i32 dim 1 : vector<2x128xf32>, i32 -> vector<2x128xf32>
    %15 = arith.maximumf %13, %14 : vector<2x128xf32>
    %c8_i32 = arith.constant 8 : i32
    %16 = tpu.dynamic_rotate %15 by %c8_i32 dim 1 : vector<2x128xf32>, i32 -> vector<2x128xf32>
    %17 = arith.maximumf %15, %16 : vector<2x128xf32>
    %c16_i32 = arith.constant 16 : i32
    %18 = tpu.dynamic_rotate %17 by %c16_i32 dim 1 : vector<2x128xf32>, i32 -> vector<2x128xf32>
    %19 = arith.maximumf %17, %18 : vector<2x128xf32>
    %c1_i32_5 = arith.constant 1 : i32
    %20 = tpu.dynamic_rotate %9 by %c1_i32_5 dim 1 : vector<2x128xf32>, i32 -> vector<2x128xf32>
    %21 = arith.maximumf %9, %20 : vector<2x128xf32>
    %c2_i32_6 = arith.constant 2 : i32
    %22 = tpu.dynamic_rotate %21 by %c2_i32_6 dim 1 : vector<2x128xf32>, i32 -> vector<2x128xf32>
    %23 = arith.maximumf %21, %22 : vector<2x128xf32>
    %c4_i32_7 = arith.constant 4 : i32
    %24 = tpu.dynamic_rotate %23 by %c4_i32_7 dim 1 : vector<2x128xf32>, i32 -> vector<2x128xf32>
    %25 = arith.maximumf %23, %24 : vector<2x128xf32>
    %c8_i32_8 = arith.constant 8 : i32
    %26 = tpu.dynamic_rotate %25 by %c8_i32_8 dim 1 : vector<2x128xf32>, i32 -> vector<2x128xf32>
    %27 = arith.maximumf %25, %26 : vector<2x128xf32>
    %c16_i32_9 = arith.constant 16 : i32
    %28 = tpu.dynamic_rotate %27 by %c16_i32_9 dim 1 : vector<2x128xf32>, i32 -> vector<2x128xf32>
    %29 = arith.maximumf %27, %28 : vector<2x128xf32>
    %c0_10 = arith.constant 0 : index
    %c0_11 = arith.constant 0 : index
    %30 = vector.load %arg3[%c0_10, %c0_11] : memref<128x128xf32, #tpu.memory_space<vmem>>, vector<128x128xf32>
    %c0_12 = arith.constant 0 : index
    %c0_13 = arith.constant 0 : index
    %31 = vector.load %arg4[%c0_12, %c0_13] : memref<128x4xf32, #tpu.memory_space<vmem>>, vector<128x4xf32>
    %c0_14 = arith.constant 0 : index
    %c0_15 = arith.constant 0 : index
    %32 = vector.load %arg5[%c0_14, %c0_15] : memref<128x4xf32, #tpu.memory_space<vmem>>, vector<128x4xf32>
    %cst_16 = arith.constant dense<0.000000e+00> : vector<2x128xf32>
    %33 = tpu.matmul %19, %30, %cst_16 {dimension_numbers = #tpu.dot_dimension_numbers<[1], [0], [0], [1], [0, 0, 1, 1], [], []>} : vector<2x128xf32>, vector<128x128xf32>, vector<2x128xf32> -> vector<2x128xf32>
    %cst_17 = arith.constant 0.000000e+00 : f32
    %34 = vector.broadcast %cst_17 : f32 to vector<2x128xf32>
    %35 = arith.maximumf %33, %34 : vector<2x128xf32>
    %cst_18 = arith.constant dense<0.000000e+00> : vector<2x128xf32>
    %36 = tpu.matmul %29, %30, %cst_18 {dimension_numbers = #tpu.dot_dimension_numbers<[1], [0], [0], [1], [0, 0, 1, 1], [], []>} : vector<2x128xf32>, vector<128x128xf32>, vector<2x128xf32> -> vector<2x128xf32>
    %cst_19 = arith.constant 0.000000e+00 : f32
    %37 = vector.broadcast %cst_19 : f32 to vector<2x128xf32>
    %38 = arith.maximumf %36, %37 : vector<2x128xf32>
    %39 = arith.truncf %35 : vector<2x128xf32> to vector<2x128xbf16>
    %40 = arith.extf %39 : vector<2x128xbf16> to vector<2x128xf32>
    %41 = arith.truncf %38 : vector<2x128xf32> to vector<2x128xbf16>
    %42 = arith.extf %41 : vector<2x128xbf16> to vector<2x128xf32>
    %cst_20 = arith.constant 0.000000e+00 : f32
    %43 = vector.broadcast %cst_20 : f32 to vector<2x128xf32>
    %44 = arith.subf %43, %0 : vector<2x128xf32>
    %45 = arith.subf %44, %42 : vector<2x128xf32>
    %46 = arith.subf %0, %40 : vector<2x128xf32>
    %47 = arith.select %3, %45, %46 : vector<2x128xi1>, vector<2x128xf32>
    %48 = math.exp %47 : vector<2x128xf32>
    %cst_21 = arith.constant 0.000000e+00 : f32
    %49 = vector.broadcast %cst_21 : f32 to vector<2x128xf32>
    %50 = arith.select %3, %48, %49 : vector<2x128xi1>, vector<2x128xf32>
    %51 = arith.subf %48, %50 : vector<2x128xf32>
    %52 = arith.truncf %51 : vector<2x128xf32> to vector<2x128xbf16>
    %53 = arith.extf %52 : vector<2x128xbf16> to vector<2x128xf32>
    %54 = arith.subf %51, %53 : vector<2x128xf32>
    %cst_22 = arith.constant dense<0.000000e+00> : vector<2x4xf32>
    %55 = tpu.matmul %53, %31, %cst_22 {dimension_numbers = #tpu.dot_dimension_numbers<[1], [0], [0], [1], [0, 0, 1, 1], [], []>} : vector<2x128xf32>, vector<128x4xf32>, vector<2x4xf32> -> vector<2x4xf32>
    %cst_23 = arith.constant dense<0.000000e+00> : vector<2x4xf32>
    %56 = tpu.matmul %54, %31, %cst_23 {dimension_numbers = #tpu.dot_dimension_numbers<[1], [0], [0], [1], [0, 0, 1, 1], [], []>} : vector<2x128xf32>, vector<128x4xf32>, vector<2x4xf32> -> vector<2x4xf32>
    %57 = arith.addf %55, %56 : vector<2x4xf32>
    %58 = arith.truncf %50 : vector<2x128xf32> to vector<2x128xbf16>
    %59 = arith.extf %58 : vector<2x128xbf16> to vector<2x128xf32>
    %60 = arith.subf %50, %59 : vector<2x128xf32>
    %cst_24 = arith.constant dense<0.000000e+00> : vector<2x4xf32>
    %61 = tpu.matmul %59, %31, %cst_24 {dimension_numbers = #tpu.dot_dimension_numbers<[1], [0], [0], [1], [0, 0, 1, 1], [], []>} : vector<2x128xf32>, vector<128x4xf32>, vector<2x4xf32> -> vector<2x4xf32>
    %cst_25 = arith.constant dense<0.000000e+00> : vector<2x4xf32>
    %62 = tpu.matmul %60, %31, %cst_25 {dimension_numbers = #tpu.dot_dimension_numbers<[1], [0], [0], [1], [0, 0, 1, 1], [], []>} : vector<2x128xf32>, vector<128x4xf32>, vector<2x4xf32> -> vector<2x4xf32>
    %63 = arith.addf %61, %62 : vector<2x4xf32>
    %cst_26 = arith.constant dense<0.000000e+00> : vector<2x4xf32>
    %64 = tpu.matmul %40, %32, %cst_26 {dimension_numbers = #tpu.dot_dimension_numbers<[1], [0], [0], [1], [0, 0, 1, 1], [], []>} : vector<2x128xf32>, vector<128x4xf32>, vector<2x4xf32> -> vector<2x4xf32>
    %cst_27 = arith.constant dense<0.000000e+00> : vector<2x4xf32>
    %65 = tpu.matmul %42, %32, %cst_27 {dimension_numbers = #tpu.dot_dimension_numbers<[1], [0], [0], [1], [0, 0, 1, 1], [], []>} : vector<2x128xf32>, vector<128x4xf32>, vector<2x4xf32> -> vector<2x4xf32>
    %cst_28 = arith.constant 0.000000e+00 : f32
    %66 = vector.broadcast %cst_28 : f32 to vector<2x4xf32>
    %67 = arith.subf %66, %64 : vector<2x4xf32>
    %68 = math.exp %67 : vector<2x4xf32>
    %69 = arith.addf %57, %68 : vector<2x4xf32>
    %70 = math.log %69 : vector<2x4xf32>
    %71 = arith.addf %64, %70 : vector<2x4xf32>
    %72 = arith.addf %71, %65 : vector<2x4xf32>
    %cst_29 = arith.constant 0.000000e+00 : f32
    %73 = vector.broadcast %cst_29 : f32 to vector<2x4xf32>
    %74 = arith.subf %73, %65 : vector<2x4xf32>
    %75 = math.exp %74 : vector<2x4xf32>
    %76 = arith.addf %63, %75 : vector<2x4xf32>
    %77 = math.log %76 : vector<2x4xf32>
    %78 = arith.addf %72, %77 : vector<2x4xf32>
    %c0_30 = arith.constant 0 : index
    %c0_31 = arith.constant 0 : index
    %79 = vector.load %arg6[%c0_30, %c0_31] : memref<2x4xf32, #tpu.memory_space<vmem>>, vector<2x4xf32>
    tpu.vector_store %arg6[%c0_30, %c0_31], %78 {strides = array<i32>} : memref<2x4xf32, #tpu.memory_space<vmem>>, vector<2x4xf32>,
    return
  }
  func.func @transform_0(%arg0: i32) -> (i32, i32) {
    %c0_i32 = arith.constant 0 : i32
    %c0_i32_0 = arith.constant 0 : i32
    return %arg0, %c0_i32 : i32, i32
  }
  func.func @transform_1(%arg0: i32) -> (i32, i32) {
    %c0_i32 = arith.constant 0 : i32
    %c0_i32_0 = arith.constant 0 : i32
    return %arg0, %c0_i32 : i32, i32
  }
  func.func @transform_2(%arg0: i32) -> (i32, i32) {
    %c0_i32 = arith.constant 0 : i32
    %c0_i32_0 = arith.constant 0 : i32
    %c0_i32_1 = arith.constant 0 : i32
    return %c0_i32, %c0_i32_0 : i32, i32
  }
  func.func @transform_3(%arg0: i32) -> (i32, i32) {
    %c0_i32 = arith.constant 0 : i32
    %c0_i32_0 = arith.constant 0 : i32
    %c0_i32_1 = arith.constant 0 : i32
    return %c0_i32, %c0_i32_0 : i32, i32
  }
  func.func @transform_4(%arg0: i32) -> (i32, i32) {
    %c0_i32 = arith.constant 0 : i32
    %c0_i32_0 = arith.constant 0 : i32
    %c0_i32_1 = arith.constant 0 : i32
    return %c0_i32, %c0_i32_0 : i32, i32
  }
  func.func @transform_5(%arg0: i32) -> (i32, i32) {
    %c0_i32 = arith.constant 0 : i32
    %c0_i32_0 = arith.constant 0 : i32
    return %arg0, %c0_i32 : i32, i32
  }
}

</mosaic_0001>

<llo_original>
// kernel: circle_loss.1
$region0: #{circle_loss.1}
  #allocation0 [shape = 'u32[]', space=smem, size = 0x4, offset = 0x4, fixed_abs, tag = 'smem constant byte address 0x4 - core index']
  #allocation1 [shape = 'u32[72,128]{1,0:T(1,128)}', space=vmem, size = 0x9000, scoped, tag = 'internal scratch']
  %s0 = inlined_call_operand.vmem [shape: f32[2,128], index: 0, kind: input, shape index: {}]
  %s1 = inlined_call_operand.vmem [shape: s8[2,128], index: 1, kind: input, shape index: {}]
  %s2 = inlined_call_operand.vmem [shape: f32[128,128], index: 2, kind: input, shape index: {}]
  %s3 = inlined_call_operand.vmem [shape: f32[128,4], index: 3, kind: input, shape index: {}]
  %s4 = inlined_call_operand.vmem [shape: f32[128,4], index: 4, kind: input, shape index: {}]
  %s5 = inlined_call_operand.vmem [shape: f32[2,4], index: 5, kind: output, shape index: {}]
  %s6 = sld [smem:[#allocation0]]
  $region30: #{circle_loss.1} parent=0
    _
  %s8 = ssub.s32 1, %s6
  %s9 = scalar_select 0, %s8, %s6
  // Predicated region
  $region2: #{circle_loss.1} parent=0 // pred_check
    _
  $region3: #{circle_loss.1} parent=0 // pred_check_branch
    %11 = sbr.rel (0) target = $region5
  $region4: #{circle_loss.1} parent=0 // pred_region
    _
  $region5: #{circle_loss.1} parent=0 // pred_fallthru
    _
  // Predicated region
  $region6: #{circle_loss.1} parent=0 // pred_check
    _
  $region7: #{circle_loss.1} parent=0 // pred_check_branch
    %13 = sbr.rel (0) target = $region9
  $region8: #{circle_loss.1} parent=0 // pred_region
    _
  $region9: #{circle_loss.1} parent=0 // pred_fallthru
    _
  // Predicated region
  $region10: #{circle_loss.1} parent=0 // pred_check
    _
  $region11: #{circle_loss.1} parent=0 // pred_check_branch
    %15 = sbr.rel (0) target = $region13
  $region12: #{circle_loss.1} parent=0 // pred_region
    _
  $region13: #{circle_loss.1} parent=0 // pred_fallthru
    _
  // Predicated region
  $region14: #{circle_loss.1} parent=0 // pred_check
    _
  $region15: #{circle_loss.1} parent=0 // pred_check_branch
    %17 = sbr.rel (0) target = $region17
  $region16: #{circle_loss.1} parent=0 // pred_region
    _
  $region17: #{circle_loss.1} parent=0 // pred_fallthru
    _
  // Predicated region
  $region18: #{circle_loss.1} parent=0 // pred_check
    _
  $region19: #{circle_loss.1} parent=0 // pred_check_branch
    %19 = sbr.rel (0) target = $region21
  $region20: #{circle_loss.1} parent=0 // pred_region
    _
  $region21: #{circle_loss.1} parent=0 // pred_fallthru
    _
  %v22 = vld [vmem:[%s0] sm:$0x3]
  %v23 = vld [vmem:[%s1] sm:$0x1]
  %vm24 = vnez %v23
  %v25 = vsel %vm24, 16843009, 0
  %v26 = vunpack.c.0.s8 %v25
  %vm27 = vcmp.ne.s32.totalorder %v26, 0
  %v28 = vsel %vm27, -1e+12, %v22
  %v29 = vsub.f32 0.0, %v22
  %v30 = vsel %vm27, %v29, -1e+12
  %31 = vrot.lane.b32.xlu0 %v28, 1
  %v32 = vpop.permute.xlu0 %31
  %v33 = vmax.f32 %v28, %v32
  %34 = vrot.lane.b32.xlu0 %v33, 2
  %v35 = vpop.permute.xlu0 %34
  %v36 = vmax.f32 %v33, %v35
  %37 = vrot.lane.b32.xlu0 %v36, 4
  %v38 = vpop.permute.xlu0 %37
  %v39 = vmax.f32 %v36, %v38
  %40 = vrot.lane.b32.xlu0 %v39, 8
  %v41 = vpop.permute.xlu0 %40
  %v42 = vmax.f32 %v39, %v41
  %43 = vrot.lane.b32.xlu0 %v42, 16
  %v44 = vpop.permute.xlu0 %43
  %v45 = vmax.f32 %v42, %v44
  %46 = vrot.lane.b32.xlu0 %v30, 1
  %v47 = vpop.permute.xlu0 %46
  %v48 = vmax.f32 %v30, %v47
  %49 = vrot.lane.b32.xlu0 %v48, 2
  %v50 = vpop.permute.xlu0 %49
  %v51 = vmax.f32 %v48, %v50
  %52 = vrot.lane.b32.xlu0 %v51, 4
  %v53 = vpop.permute.xlu0 %52
  %v54 = vmax.f32 %v51, %v53
  %55 = vrot.lane.b32.xlu0 %v54, 8
  %v56 = vpop.permute.xlu0 %55
  %v57 = vmax.f32 %v54, %v56
  %58 = vrot.lane.b32.xlu0 %v57, 16
  %v59 = vpop.permute.xlu0 %58
  %v60 = vmax.f32 %v57, %v59
  %v61 = vld [vmem:[%s2] sm:$0xff]
  %v62 = vld [vmem:[%s2 + $0x8] sm:$0xff]
  %v63 = vld [vmem:[%s2 + $0x10] sm:$0xff]
  %v64 = vld [vmem:[%s2 + $0x18] sm:$0xff]
  %v65 = vld [vmem:[%s2 + $0x20] sm:$0xff]
  %v66 = vld [vmem:[%s2 + $0x28] sm:$0xff]
  %v67 = vld [vmem:[%s2 + $0x30] sm:$0xff]
  %v68 = vld [vmem:[%s2 + $0x38] sm:$0xff]
  %v69 = vld [vmem:[%s2 + $0x40] sm:$0xff]
  %v70 = vld [vmem:[%s2 + $0x48] sm:$0xff]
  %v71 = vld [vmem:[%s2 + $0x50] sm:$0xff]
  %v72 = vld [vmem:[%s2 + $0x58] sm:$0xff]
  %v73 = vld [vmem:[%s2 + $0x60] sm:$0xff]
  %v74 = vld [vmem:[%s2 + $0x68] sm:$0xff]
  %v75 = vld [vmem:[%s2 + $0x70] sm:$0xff]
  %v76 = vld [vmem:[%s2 + $0x78] sm:$0xff]
  %v77 = vld [vmem:[%s3] sm:$0xff]
  %v78 = vld [vmem:[%s3 + $0x8] sm:$0xff]
  %v79 = vld [vmem:[%s3 + $0x10] sm:$0xff]
  %v80 = vld [vmem:[%s3 + $0x18] sm:$0xff]
  %v81 = vld [vmem:[%s3 + $0x20] sm:$0xff]
  %v82 = vld [vmem:[%s3 + $0x28] sm:$0xff]
  %v83 = vld [vmem:[%s3 + $0x30] sm:$0xff]
  %v84 = vld [vmem:[%s3 + $0x38] sm:$0xff]
  %v85 = vld [vmem:[%s3 + $0x40] sm:$0xff]
  %v86 = vld [vmem:[%s3 + $0x48] sm:$0xff]
  %v87 = vld [vmem:[%s3 + $0x50] sm:$0xff]
  %v88 = vld [vmem:[%s3 + $0x58] sm:$0xff]
  %v89 = vld [vmem:[%s3 + $0x60] sm:$0xff]
  %v90 = vld [vmem:[%s3 + $0x68] sm:$0xff]
  %v91 = vld [vmem:[%s3 + $0x70] sm:$0xff]
  %v92 = vld [vmem:[%s3 + $0x78] sm:$0xff]
  %v93 = vld [vmem:[%s4] sm:$0xff]
  %v94 = vld [vmem:[%s4 + $0x8] sm:$0xff]
  %v95 = vld [vmem:[%s4 + $0x10] sm:$0xff]
  %v96 = vld [vmem:[%s4 + $0x18] sm:$0xff]
  %v97 = vld [vmem:[%s4 + $0x20] sm:$0xff]
  %v98 = vld [vmem:[%s4 + $0x28] sm:$0xff]
  %v99 = vld [vmem:[%s4 + $0x30] sm:$0xff]
  %v100 = vld [vmem:[%s4 + $0x38] sm:$0xff]
  %v101 = vld [vmem:[%s4 + $0x40] sm:$0xff]
  %v102 = vld [vmem:[%s4 + $0x48] sm:$0xff]
  %v103 = vld [vmem:[%s4 + $0x50] sm:$0xff]
  %v104 = vld [vmem:[%s4 + $0x58] sm:$0xff]
  %v105 = vld [vmem:[%s4 + $0x60] sm:$0xff]
  %v106 = vld [vmem:[%s4 + $0x68] sm:$0xff]
  %v107 = vld [vmem:[%s4 + $0x70] sm:$0xff]
  %v108 = vld [vmem:[%s4 + $0x78] sm:$0xff]
  %109 = vmatpush.msra.mxu0 %v76
  %110 = vmatpush.msra.mxu0 %v75
  %111 = vmatpush.msra.mxu0 %v74
  %112 = vmatpush.msra.mxu0 %v73
  %113 = vmatpush.msra.mxu0 %v72
  %114 = vmatpush.msra.mxu0 %v71
  %115 = vmatpush.msra.mxu0 %v70
  %116 = vmatpush.msra.mxu0 %v69
  %117 = vmatpush.msra.mxu0 %v68
  %118 = vmatpush.msra.mxu0 %v67
  %119 = vmatpush.msra.mxu0 %v66
  %120 = vmatpush.msra.mxu0 %v65
  %121 = vmatpush.msra.mxu0 %v64
  %122 = vmatpush.msra.mxu0 %v63
  %123 = vmatpush.msra.mxu0 %v62
  %124 = vmatpush.msra.mxu0 %v61
  %125 = vmatmul.f32.gmra.mxu0 %v45
  %v126 = vpop.f32.mrf.mxu0
  %v127 = vadd.f32 0.0, %v126
  %128 = vdwg.mxu0
  %v129 = vmax.f32 %v127, 0.0
  %130 = vmatpush.msra.mxu0 %v76
  %131 = vmatpush.msra.mxu0 %v75
  %132 = vmatpush.msra.mxu0 %v74
  %133 = vmatpush.msra.mxu0 %v73
  %134 = vmatpush.msra.mxu0 %v72
  %135 = vmatpush.msra.mxu0 %v71
  %136 = vmatpush.msra.mxu0 %v70
  %137 = vmatpush.msra.mxu0 %v69
  %138 = vmatpush.msra.mxu0 %v68
  %139 = vmatpush.msra.mxu0 %v67
  %140 = vmatpush.msra.mxu0 %v66
  %141 = vmatpush.msra.mxu0 %v65
  %142 = vmatpush.msra.mxu0 %v64
  %143 = vmatpush.msra.mxu0 %v63
  %144 = vmatpush.msra.mxu0 %v62
  %145 = vmatpush.msra.mxu0 %v61
  %146 = vmatmul.f32.gmra.mxu0 %v60
  %v147 = vpop.f32.mrf.mxu0
  %v148 = vadd.f32 0.0, %v147
  %149 = vdwg.mxu0
  %v150 = vmax.f32 %v148, 0.0
  %v151 = vpack.c.bf16 %v129, %v129
  %v152 = vunpack.c.l.bf16 %v151
  %v153 = vpack.c.bf16 %v150, %v150
  %v154 = vunpack.c.l.bf16 %v153
  %v155 = vsub.f32 %v29, %v154
  %v156 = vsub.f32 %v22, %v152
  %v157 = vsel %vm27, %v155, %v156
  %v158 = vmul.f32 %v157, 1.442695
  %v159 = vpow.pop %v158
  %v160 = vsel %vm27, %v159, 0.0
  %v161 = vsub.f32 %v159, %v160
  %v162 = vpack.c.bf16 %v161, %v161
  %v163 = vunpack.c.l.bf16 %v162
  %v164 = vsub.f32 %v161, %v163
  %165 = vmatpush.msra.mxu0 %v92
  %166 = vmatpush.msra.mxu0 %v91
  %167 = vmatpush.msra.mxu0 %v90
  %168 = vmatpush.msra.mxu0 %v89
  %169 = vmatpush.msra.mxu0 %v88
  %170 = vmatpush.msra.mxu0 %v87
  %171 = vmatpush.msra.mxu0 %v86
  %172 = vmatpush.msra.mxu0 %v85
  %173 = vmatpush.msra.mxu0 %v84
  %174 = vmatpush.msra.mxu0 %v83
  %175 = vmatpush.msra.mxu0 %v82
  %176 = vmatpush.msra.mxu0 %v81
  %177 = vmatpush.msra.mxu0 %v80
  %178 = vmatpush.msra.mxu0 %v79
  %179 = vmatpush.msra.mxu0 %v78
  %180 = vmatpush.msra.mxu0 %v77
  %181 = vmatmul.f32.gmra.mxu0 %v164
  %v182 = vpop.f32.mrf.mxu0
  %v183 = vadd.f32 0.0, %v182
  %184 = vdwg.mxu0
  %185 = vmatpush.msra.mxu0 %v92
  %186 = vmatpush.msra.mxu0 %v91
  %187 = vmatpush.msra.mxu0 %v90
  %188 = vmatpush.msra.mxu0 %v89
  %189 = vmatpush.msra.mxu0 %v88
  %190 = vmatpush.msra.mxu0 %v87
  %191 = vmatpush.msra.mxu0 %v86
  %192 = vmatpush.msra.mxu0 %v85
  %193 = vmatpush.msra.mxu0 %v84
  %194 = vmatpush.msra.mxu0 %v83
  %195 = vmatpush.msra.mxu0 %v82
  %196 = vmatpush.msra.mxu0 %v81
  %197 = vmatpush.msra.mxu0 %v80
  %198 = vmatpush.msra.mxu0 %v79
  %199 = vmatpush.msra.mxu0 %v78
  %200 = vmatpush.msra.mxu0 %v77
  %201 = vmatmul.f32.gmra.mxu0 %v163
  %v202 = vpop.f32.mrf.mxu0
  %v203 = vadd.f32 %v183, %v202
  %204 = vdwg.mxu0
  %v205 = vpack.c.bf16 %v160, %v160
  %v206 = vunpack.c.l.bf16 %v205
  %v207 = vsub.f32 %v160, %v206
  %208 = vmatpush.msra.mxu0 %v92
  %209 = vmatpush.msra.mxu0 %v91
  %210 = vmatpush.msra.mxu0 %v90
  %211 = vmatpush.msra.mxu0 %v89
  %212 = vmatpush.msra.mxu0 %v88
  %213 = vmatpush.msra.mxu0 %v87
  %214 = vmatpush.msra.mxu0 %v86
  %215 = vmatpush.msra.mxu0 %v85
  %216 = vmatpush.msra.mxu0 %v84
  %217 = vmatpush.msra.mxu0 %v83
  %218 = vmatpush.msra.mxu0 %v82
  %219 = vmatpush.msra.mxu0 %v81
  %220 = vmatpush.msra.mxu0 %v80
  %221 = vmatpush.msra.mxu0 %v79
  %222 = vmatpush.msra.mxu0 %v78
  %223 = vmatpush.msra.mxu0 %v77
  %224 = vmatmul.f32.gmra.mxu0 %v207
  %v225 = vpop.f32.mrf.mxu0
  %v226 = vadd.f32 0.0, %v225
  %227 = vdwg.mxu0
  %228 = vmatpush.msra.mxu0 %v92
  %229 = vmatpush.msra.mxu0 %v91
  %230 = vmatpush.msra.mxu0 %v90
  %231 = vmatpush.msra.mxu0 %v89
  %232 = vmatpush.msra.mxu0 %v88
  %233 = vmatpush.msra.mxu0 %v87
  %234 = vmatpush.msra.mxu0 %v86
  %235 = vmatpush.msra.mxu0 %v85
  %236 = vmatpush.msra.mxu0 %v84
  %237 = vmatpush.msra.mxu0 %v83
  %238 = vmatpush.msra.mxu0 %v82
  %239 = vmatpush.msra.mxu0 %v81
  %240 = vmatpush.msra.mxu0 %v80
  %241 = vmatpush.msra.mxu0 %v79
  %242 = vmatpush.msra.mxu0 %v78
  %243 = vmatpush.msra.mxu0 %v77
  %244 = vmatmul.f32.gmra.mxu0 %v206
  %v245 = vpop.f32.mrf.mxu0
  %v246 = vadd.f32 %v226, %v245
  %247 = vdwg.mxu0
  %248 = vmatpush.msra.mxu0 %v108
  %249 = vmatpush.msra.mxu0 %v107
  %250 = vmatpush.msra.mxu0 %v106
  %251 = vmatpush.msra.mxu0 %v105
  %252 = vmatpush.msra.mxu0 %v104
  %253 = vmatpush.msra.mxu0 %v103
  %254 = vmatpush.msra.mxu0 %v102
  %255 = vmatpush.msra.mxu0 %v101
  %256 = vmatpush.msra.mxu0 %v100
  %257 = vmatpush.msra.mxu0 %v99
  %258 = vmatpush.msra.mxu0 %v98
  %259 = vmatpush.msra.mxu0 %v97
  %260 = vmatpush.msra.mxu0 %v96
  %261 = vmatpush.msra.mxu0 %v95
  %262 = vmatpush.msra.mxu0 %v94
  %263 = vmatpush.msra.mxu0 %v93
  %264 = vmatmul.f32.gmra.mxu0 %v152
  %v265 = vpop.f32.mrf.mxu0
  %v266 = vadd.f32 0.0, %v265
  %267 = vdwg.mxu0
  %268 = vmatpush.msra.mxu0 %v108
  %269 = vmatpush.msra.mxu0 %v107
  %270 = vmatpush.msra.mxu0 %v106
  %271 = vmatpush.msra.mxu0 %v105
  %272 = vmatpush.msra.mxu0 %v104
  %273 = vmatpush.msra.mxu0 %v103
  %274 = vmatpush.msra.mxu0 %v102
  %275 = vmatpush.msra.mxu0 %v101
  %276 = vmatpush.msra.mxu0 %v100
  %277 = vmatpush.msra.mxu0 %v99
  %278 = vmatpush.msra.mxu0 %v98
  %279 = vmatpush.msra.mxu0 %v97
  %280 = vmatpush.msra.mxu0 %v96
  %281 = vmatpush.msra.mxu0 %v95
  %282 = vmatpush.msra.mxu0 %v94
  %283 = vmatpush.msra.mxu0 %v93
  %284 = vmatmul.f32.gmra.mxu0 %v154
  %v285 = vpop.f32.mrf.mxu0
  %v286 = vadd.f32 0.0, %v285
  %287 = vdwg.mxu0
  %v288 = vsub.f32 0.0, %v266
  %v289 = vmul.f32 %v288, 1.442695
  %v290 = vpow.pop %v289
  %v291 = vadd.f32 %v203, %v290
  %v292 = vlog2.pop %v291
  %v293 = vmul.f32 %v292, 0.6931472
  %v294 = vadd.f32 %v266, %v293
  %v295 = vadd.f32 %v294, %v286
  %v296 = vsub.f32 0.0, %v286
  %v297 = vmul.f32 %v296, 1.442695
  %v298 = vpow.pop %v297
  %v299 = vadd.f32 %v246, %v298
  %v300 = vlog2.pop %v299
  %v301 = vmul.f32 %v300, 0.6931472
  %v302 = vadd.f32 %v295, %v301
  %vm303 = vcmask 25600
  %304 = vst.msk [vmem:[%s5] sm:$0x3] %vm303, %v302
  // Predicated region
  $region22: #{circle_loss.1} parent=0 // pred_check
    _
  $region23: #{circle_loss.1} parent=0 // pred_check_branch
    %306 = sbr.rel (0) target = $region25
  $region24: #{circle_loss.1} parent=0 // pred_region
    _
  $region25: #{circle_loss.1} parent=0 // pred_fallthru
    _
  // Predicated region
  $region26: #{circle_loss.1} parent=0 // pred_check
    _
  $region27: #{circle_loss.1} parent=0 // pred_check_branch
    %308 = sbr.rel (0) target = $region29
  $region28: #{circle_loss.1} parent=0 // pred_region
    _
  $region29: #{circle_loss.1} parent=0 // pred_fallthru
    _

</llo_original>
